<compile_context>
chip_gen: v5e
topology: v5e:2x2
jax: 0.10.0
libtpu: 0.0.40
codegen_flags: <defaults>
</compile_context>

<pallas_src>
import jax
import jax.numpy as jnp
from jax.experimental import pallas as pl
from jax.experimental.pallas import tpu as pltpu

HID = 200          # hidden width of the PyTorch module
OUT = 75           # number of classes
NPOS = 4           # positions per example (TYPE == 'cat')
NVOCAB = 18        # pos_embed vocabulary
P_DIM = 50         # pos embedding dim
POS_TAB = NPOS * NVOCAB          # 72 rows in the fused position table
POS_TAB_P = 128                  # lane-dense padding of the table rows


def _round_up(x, m):
    return ((x + m - 1) // m) * m


def _choose_tiles(B):
    """Pick (padded batch, batch tile). <=1024 rows/tile, >=2 grid steps when
    B > 16 (v7x megacore), padding waste bounded to <8 rows per tile."""
    Bp = _round_up(B, 8)
    nsteps = max(1, -(-Bp // 1024))
    if nsteps == 1 and Bp > 16:
        nsteps = 2
    TB = _round_up(-(-Bp // nsteps), 8)
    return nsteps * TB, TB


def _classifier_kernel(emb_ref, pos_ref, ww_ref, ptab_ref, b1_ref,
                       w3_ref, b3_ref, out_ref):
    tb = emb_ref.shape[0]
    tab_w = ptab_ref.shape[0]            # 128 (lane-dense)
    pos = pos_ref[...]                   # (TB, 4) int32
    n_pos = pos.shape[1]

    # Multi-hot encode the position ids: column j*18 + v is 1 iff pos[:, j] == v.
    # Pure VPU work (iota + compares); padded columns 72..127 never fire.
    col = jax.lax.broadcasted_iota(jnp.int32, (tb, tab_w), 1)
    onehot = jnp.zeros((tb, tab_w), jnp.float32)
    for j in range(n_pos):
        onehot = onehot + ((col - j * NVOCAB) == pos[:, j:j + 1]).astype(jnp.float32)

    # hidden = emb @ word_w + multihot @ pos_table + (word_b + pos_b), ReLU
    h = jnp.dot(emb_ref[...], ww_ref[...], preferred_element_type=jnp.float32)
    h = h + jnp.dot(onehot, ptab_ref[...], preferred_element_type=jnp.float32)
    h = jnp.maximum(h + b1_ref[...], 0.0)

    # output layer (lane-dense 128-wide store; real 75 cols sliced outside)
    out_ref[...] = (
        jnp.dot(h, w3_ref[...], preferred_element_type=jnp.float32) + b3_ref[...]
    ).astype(out_ref.dtype)


def prepare_params(params):
    """One-time weight preparation (hoisted out of the per-call forward)."""
    Hp = _round_up(HID, 128)     # 200 -> 256
    Op = _round_up(OUT, 128)     # 75  -> 128

    # Fused position table: tab[j*18 + v, :] = pos_embed[v] @ pos_w[j*50:(j+1)*50, :]
    pw = params["pos_w"].reshape(NPOS, P_DIM, HID)
    tab = jnp.einsum("vp,jph->jvh", params["pos_embed"], pw).reshape(POS_TAB, HID)

    b1 = params["word_b"] + params["pos_b"]          # fused first-layer bias

    return {
        "word_w": jnp.pad(params["word_w"], ((0, 0), (0, Hp - HID))),
        "pos_tab": jnp.pad(tab, ((0, POS_TAB_P - POS_TAB), (0, Hp - HID))),
        "b1": jnp.pad(b1, ((0, 0), (0, Hp - HID))),
        "w3": jnp.pad(params["out_w"], ((0, Hp - HID), (0, Op - OUT))),
        "b3": jnp.pad(params["out_b"], ((0, 0), (0, Op - OUT))),
    }


def multiclass_classifier(embeddings, pos, prepared, *, padded_output=False):
    """TYPE == 'cat' forward pass. `prepared` comes from prepare_params()."""
    B, e_dim = embeddings.shape
    n_pos = pos.shape[1]
    word_w, pos_tab = prepared["word_w"], prepared["pos_tab"]
    b1, w3, b3 = prepared["b1"], prepared["w3"], prepared["b3"]
    Hp, Op, Tp = word_w.shape[1], w3.shape[1], pos_tab.shape[0]

    Bp, TB = _choose_tiles(B)
    if Bp != B:
        embeddings = jnp.pad(embeddings, ((0, Bp - B), (0, 0)))
        pos = jnp.pad(pos, ((0, Bp - B), (0, 0)))     # pads with index 0 (valid)

    flops = 2 * Bp * Hp * (e_dim + Tp + Op)
    bytes_accessed = 4 * (Bp * (e_dim + n_pos + Op)
                          + e_dim * Hp + Tp * Hp + Hp + Hp * Op + Op)

    out_p = pl.pallas_call(
        _classifier_kernel,
        out_shape=jax.ShapeDtypeStruct((Bp, Op), jnp.float32),
        grid=(Bp // TB,),
        in_specs=[
            pl.BlockSpec((TB, e_dim), lambda i: (i, 0)),   # activations: per-tile
            pl.BlockSpec((TB, n_pos), lambda i: (i, 0)),   # raw int32 pos ids
            pl.BlockSpec((e_dim, Hp), lambda i: (0, 0)),   # weights: VMEM-resident
            pl.BlockSpec((Tp, Hp), lambda i: (0, 0)),
            pl.BlockSpec((1, Hp), lambda i: (0, 0)),
            pl.BlockSpec((Hp, Op), lambda i: (0, 0)),
            pl.BlockSpec((1, Op), lambda i: (0, 0)),
        ],
        out_specs=pl.BlockSpec((TB, Op), lambda i: (i, 0)),
        compiler_params=pltpu.CompilerParams(
            dimension_semantics=("parallel",)),
        cost_estimate=pl.CostEstimate(
            flops=flops, transcendentals=0, bytes_accessed=bytes_accessed),
    )(embeddings, pos, word_w, pos_tab, b1, w3, b3)

    if padded_output:
        return out_p[:B]            # keep lane-dense 128-wide logits
    return out_p[:B, :OUT]


def init_params(e_dim, key):
    """Deterministic parameter init matching the PyTorch module's shapes."""
    ks = jax.random.split(key, 7)
    scale = 0.05
    return {
        "pos_embed": scale * jax.random.normal(ks[0], (NVOCAB, P_DIM), jnp.float32),
        "word_w":    scale * jax.random.normal(ks[1], (e_dim, HID), jnp.float32),
        "word_b":    scale * jax.random.normal(ks[2], (1, HID), jnp.float32),
        "pos_w":     scale * jax.random.normal(ks[3], (P_DIM * NPOS, HID), jnp.float32),
        "pos_b":     scale * jax.random.normal(ks[4], (1, HID), jnp.float32),
        "out_w":     scale * jax.random.normal(ks[5], (HID, OUT), jnp.float32),
        "out_b":     scale * jax.random.normal(ks[6], (1, OUT), jnp.float32),
    }


def reference_forward(embeddings, pos, params):
    pos_embeds = jnp.take(params["pos_embed"], pos, axis=0)
    pos_flat = pos_embeds.reshape(pos.shape[0], -1)
    lin1 = embeddings @ params["word_w"] + params["word_b"]
    lin2 = pos_flat @ params["pos_w"] + params["pos_b"]
    h = jnp.maximum(lin1 + lin2, 0.0)
    return h @ params["out_w"] + params["out_b"]


# TODO(synk): the TYPE == 'mean' branch of the PyTorch module is not implemented
# (the module is configured with TYPE == 'cat').

if __name__ == "__main__":
    B, E_DIM = 8, 32
    key = jax.random.PRNGKey(0)
    k_emb, k_pos, k_par = jax.random.split(key, 3)

    embeddings = jax.random.normal(k_emb, (B, E_DIM), jnp.float32)
    pos = jax.random.randint(k_pos, (B, NPOS), 0, NVOCAB, dtype=jnp.int32)
    params = init_params(E_DIM, k_par)

    prepared = prepare_params(params)               # one-time weight prep (cached)
    fwd = jax.jit(multiclass_classifier)

    out = jax.block_until_ready(fwd(embeddings, pos, prepared))

    ref = reference_forward(embeddings, pos, params)
    assert out.shape == (B, OUT)
    assert jnp.allclose(out, ref, atol=1e-5, rtol=1e-5)
    print("KERNEL_OK")
</pallas_src>

<mosaic_0001>
module attributes {stable_mosaic.version = 11 : i64} {
  func.func @_classifier_kernel(%arg0: i32, %arg1: memref<8x32xf32, #tpu.memory_space<vmem>>, %arg2: memref<8x4xi32, #tpu.memory_space<vmem>>, %arg3: memref<32x256xf32, #tpu.memory_space<vmem>>, %arg4: memref<128x256xf32, #tpu.memory_space<vmem>>, %arg5: memref<1x256xf32, #tpu.memory_space<vmem>>, %arg6: memref<256x128xf32, #tpu.memory_space<vmem>>, %arg7: memref<1x128xf32, #tpu.memory_space<vmem>>, %arg8: memref<8x128xf32, #tpu.memory_space<vmem>>) attributes {dimension_semantics = [#tpu.dimension_semantics<parallel>], iteration_bounds = array<i64: 1>, scalar_prefetch = 0 : i64, scratch_operands = 0 : i64, tpu.core_type = #tpu.core_type<tc>, window_params = [{transform_indices = @transform_0, window_bounds = array<i64: 8, 32>}, {transform_indices = @transform_1, window_bounds = array<i64: 8, 4>}, {pipeline_mode = #tpu.pipeline_mode<synchronous>, transform_indices = @transform_2, window_bounds = array<i64: 32, 256>}, {pipeline_mode = #tpu.pipeline_mode<synchronous>, transform_indices = @transform_3, window_bounds = array<i64: 128, 256>}, {pipeline_mode = #tpu.pipeline_mode<synchronous>, transform_indices = @transform_4, window_bounds = array<i64: 1, 256>}, {pipeline_mode = #tpu.pipeline_mode<synchronous>, transform_indices = @transform_5, window_bounds = array<i64: 256, 128>}, {pipeline_mode = #tpu.pipeline_mode<synchronous>, transform_indices = @transform_6, window_bounds = array<i64: 1, 128>}, {transform_indices = @transform_7, window_bounds = array<i64: 8, 128>}]} {
    %c0 = arith.constant 0 : index
    %c0_0 = arith.constant 0 : index
    %0 = vector.load %arg2[%c0, %c0_0] : memref<8x4xi32, #tpu.memory_space<vmem>>, vector<8x4xi32>
    %1 = tpu.iota {dimensions = array<i32: 1>} : vector<8x128xi32>
    %cst = arith.constant 0.000000e+00 : f32
    %2 = vector.broadcast %cst : f32 to vector<8x128xf32>
    %c0_i32 = arith.constant 0 : i32
    %3 = vector.broadcast %c0_i32 : i32 to vector<8x128xi32>
    %4 = arith.subi %1, %3 : vector<8x128xi32>
    %5 = vector.extract_strided_slice %0 {offsets = [0, 0], sizes = [8, 1], strides = [1, 1]} : vector<8x4xi32> to vector<8x1xi32>
    %6 = vector.broadcast %5 : vector<8x1xi32> to vector<8x128xi32>
    %7 = arith.cmpi eq, %4, %6 : vector<8x128xi32>
    %8 = arith.extui %7 : vector<8x128xi1> to vector<8x128xi32>
    %9 = arith.sitofp %8 : vector<8x128xi32> to vector<8x128xf32>
    %10 = arith.addf %2, %9 : vector<8x128xf32>
    %c18_i32 = arith.constant 18 : i32
    %11 = vector.broadcast %c18_i32 : i32 to vector<8x128xi32>
    %12 = arith.subi %1, %11 : vector<8x128xi32>
    %13 = vector.extract_strided_slice %0 {offsets = [0, 1], sizes = [8, 1], strides = [1, 1]} : vector<8x4xi32> to vector<8x1xi32>
    %14 = vector.broadcast %13 : vector<8x1xi32> to vector<8x128xi32>
    %15 = arith.cmpi eq, %12, %14 : vector<8x128xi32>
    %16 = arith.extui %15 : vector<8x128xi1> to vector<8x128xi32>
    %17 = arith.sitofp %16 : vector<8x128xi32> to vector<8x128xf32>
    %18 = arith.addf %10, %17 : vector<8x128xf32>
    %c36_i32 = arith.constant 36 : i32
    %19 = vector.broadcast %c36_i32 : i32 to vector<8x128xi32>
    %20 = arith.subi %1, %19 : vector<8x128xi32>
    %21 = vector.extract_strided_slice %0 {offsets = [0, 2], sizes = [8, 1], strides = [1, 1]} : vector<8x4xi32> to vector<8x1xi32>
    %22 = vector.broadcast %21 : vector<8x1xi32> to vector<8x128xi32>
    %23 = arith.cmpi eq, %20, %22 : vector<8x128xi32>
    %24 = arith.extui %23 : vector<8x128xi1> to vector<8x128xi32>
    %25 = arith.sitofp %24 : vector<8x128xi32> to vector<8x128xf32>
    %26 = arith.addf %18, %25 : vector<8x128xf32>
    %c54_i32 = arith.constant 54 : i32
    %27 = vector.broadcast %c54_i32 : i32 to vector<8x128xi32>
    %28 = arith.subi %1, %27 : vector<8x128xi32>
    %29 = vector.extract_strided_slice %0 {offsets = [0, 3], sizes = [8, 1], strides = [1, 1]} : vector<8x4xi32> to vector<8x1xi32>
    %30 = vector.broadcast %29 : vector<8x1xi32> to vector<8x128xi32>
    %31 = arith.cmpi eq, %28, %30 : vector<8x128xi32>
    %32 = arith.extui %31 : vector<8x128xi1> to vector<8x128xi32>
    %33 = arith.sitofp %32 : vector<8x128xi32> to vector<8x128xf32>
    %34 = arith.addf %26, %33 : vector<8x128xf32>
    %c0_1 = arith.constant 0 : index
    %c0_2 = arith.constant 0 : index
    %35 = vector.load %arg1[%c0_1, %c0_2] : memref<8x32xf32, #tpu.memory_space<vmem>>, vector<8x32xf32>
    %c0_3 = arith.constant 0 : index
    %c0_4 = arith.constant 0 : index
    %36 = vector.load %arg3[%c0_3, %c0_4] : memref<32x256xf32, #tpu.memory_space<vmem>>, vector<32x256xf32>
    %cst_5 = arith.constant dense<0.000000e+00> : vector<8x256xf32>
    %37 = tpu.matmul %35, %36, %cst_5 {dimension_numbers = #tpu.dot_dimension_numbers<[1], [0], [0], [1], [0, 0, 1, 1], [], []>} : vector<8x32xf32>, vector<32x256xf32>, vector<8x256xf32> -> vector<8x256xf32>
    %c0_6 = arith.constant 0 : index
    %c0_7 = arith.constant 0 : index
    %38 = vector.load %arg4[%c0_6, %c0_7] : memref<128x256xf32, #tpu.memory_space<vmem>>, vector<128x256xf32>
    %cst_8 = arith.constant dense<0.000000e+00> : vector<8x256xf32>
    %39 = tpu.matmul %34, %38, %cst_8 {dimension_numbers = #tpu.dot_dimension_numbers<[1], [0], [0], [1], [0, 0, 1, 1], [], []>} : vector<8x128xf32>, vector<128x256xf32>, vector<8x256xf32> -> vector<8x256xf32>
    %40 = arith.addf %37, %39 : vector<8x256xf32>
    %c0_9 = arith.constant 0 : index
    %c0_10 = arith.constant 0 : index
    %41 = vector.load %arg5[%c0_9, %c0_10] : memref<1x256xf32, #tpu.memory_space<vmem>>, vector<1x256xf32>
    %42 = vector.broadcast %41 : vector<1x256xf32> to vector<8x256xf32>
    %43 = arith.addf %40, %42 : vector<8x256xf32>
    %cst_11 = arith.constant 0.000000e+00 : f32
    %44 = vector.broadcast %cst_11 : f32 to vector<8x256xf32>
    %45 = arith.maximumf %43, %44 : vector<8x256xf32>
    %c0_12 = arith.constant 0 : index
    %c0_13 = arith.constant 0 : index
    %46 = vector.load %arg6[%c0_12, %c0_13] : memref<256x128xf32, #tpu.memory_space<vmem>>, vector<256x128xf32>
    %cst_14 = arith.constant dense<0.000000e+00> : vector<8x128xf32>
    %47 = tpu.matmul %45, %46, %cst_14 {dimension_numbers = #tpu.dot_dimension_numbers<[1], [0], [0], [1], [0, 0, 1, 1], [], []>} : vector<8x256xf32>, vector<256x128xf32>, vector<8x128xf32> -> vector<8x128xf32>
    %c0_15 = arith.constant 0 : index
    %c0_16 = arith.constant 0 : index
    %48 = vector.load %arg7[%c0_15, %c0_16] : memref<1x128xf32, #tpu.memory_space<vmem>>, vector<1x128xf32>
    %49 = vector.broadcast %48 : vector<1x128xf32> to vector<8x128xf32>
    %50 = arith.addf %47, %49 : vector<8x128xf32>
    %c0_17 = arith.constant 0 : index
    %c0_18 = arith.constant 0 : index
    %51 = vector.load %arg8[%c0_17, %c0_18] : memref<8x128xf32, #tpu.memory_space<vmem>>, vector<8x128xf32>
    tpu.vector_store %arg8[%c0_17, %c0_18], %50 {strides = array<i32>} : memref<8x128xf32, #tpu.memory_space<vmem>>, vector<8x128xf32>,
    return
  }
  func.func @transform_0(%arg0: i32) -> (i32, i32) {
    %c0_i32 = arith.constant 0 : i32
    %c0_i32_0 = arith.constant 0 : i32
    return %arg0, %c0_i32 : i32, i32
  }
  func.func @transform_1(%arg0: i32) -> (i32, i32) {
    %c0_i32 = arith.constant 0 : i32
    %c0_i32_0 = arith.constant 0 : i32
    return %arg0, %c0_i32 : i32, i32
  }
  func.func @transform_2(%arg0: i32) -> (i32, i32) {
    %c0_i32 = arith.constant 0 : i32
    %c0_i32_0 = arith.constant 0 : i32
    %c0_i32_1 = arith.constant 0 : i32
    return %c0_i32, %c0_i32_0 : i32, i32
  }
  func.func @transform_3(%arg0: i32) -> (i32, i32) {
    %c0_i32 = arith.constant 0 : i32
    %c0_i32_0 = arith.constant 0 : i32
    %c0_i32_1 = arith.constant 0 : i32
    return %c0_i32, %c0_i32_0 : i32, i32
  }
  func.func @transform_4(%arg0: i32) -> (i32, i32) {
    %c0_i32 = arith.constant 0 : i32
    %c0_i32_0 = arith.constant 0 : i32
    %c0_i32_1 = arith.constant 0 : i32
    return %c0_i32, %c0_i32_0 : i32, i32
  }
  func.func @transform_5(%arg0: i32) -> (i32, i32) {
    %c0_i32 = arith.constant 0 : i32
    %c0_i32_0 = arith.constant 0 : i32
    %c0_i32_1 = arith.constant 0 : i32
    return %c0_i32, %c0_i32_0 : i32, i32
  }
  func.func @transform_6(%arg0: i32) -> (i32, i32) {
    %c0_i32 = arith.constant 0 : i32
    %c0_i32_0 = arith.constant 0 : i32
    %c0_i32_1 = arith.constant 0 : i32
    return %c0_i32, %c0_i32_0 : i32, i32
  }
  func.func @transform_7(%arg0: i32) -> (i32, i32) {
    %c0_i32 = arith.constant 0 : i32
    %c0_i32_0 = arith.constant 0 : i32
    return %arg0, %c0_i32 : i32, i32
  }
}

</mosaic_0001>

<llo_original>
// kernel: multiclass_classifier.1
$region0: #{multiclass_classifier.1}
  #allocation0 [shape = 'u32[]', space=smem, size = 0x4, offset = 0x4, fixed_abs, tag = 'smem constant byte address 0x4 - core index']
  #allocation1 [shape = 'u32[72,128]{1,0:T(1,128)}', space=vmem, size = 0x9000, scoped, tag = 'internal scratch']
  %s0 = inlined_call_operand.vmem [shape: f32[8,32], index: 0, kind: input, shape index: {}]
  %s1 = inlined_call_operand.vmem [shape: s32[8,4], index: 1, kind: input, shape index: {}]
  %s2 = inlined_call_operand.hbm [shape: f32[32,256], index: 2, kind: input, shape index: {}]
  %s3 = inlined_call_operand.hbm [shape: f32[128,256], index: 3, kind: input, shape index: {}]
  %s4 = inlined_call_operand.vmem [shape: f32[1,256], index: 4, kind: input, shape index: {}]
  %s5 = inlined_call_operand.hbm [shape: f32[256,128], index: 5, kind: input, shape index: {}]
  %s6 = inlined_call_operand.vmem [shape: f32[1,128], index: 6, kind: input, shape index: {}]
  %s7 = inlined_call_operand.hbm [shape: f32[8,128], index: 7, kind: output, shape index: {}]
  %s8 = sld [smem:[#allocation0]]
  $region50: #{multiclass_classifier.1} parent=0
    _
  %s10 = ssub.s32 1, %s8
  %s11 = scalar_select 0, %s10, %s8
  $region1: #{multiclass_classifier.1} parent=0
    #allocation2 [shape = 'u8[32768]{0}', space=vmem, size = 0x8000, scoped, tag = 'input window, operand 2, single buffered']
    #allocation3 [shape = 's32[1]{0}', space=sflag, size = 0x4, scoped, tag = 'scoped memory for multiclass_classifier.1']
    #allocation4 [shape = 's32[1]{0}', space=sflag, size = 0x4, scoped, tag = 'scoped memory for multiclass_classifier.1']
    #allocation5 [shape = 'u8[131072]{0}', space=vmem, size = 0x20000, scoped, tag = 'input window, operand 3, single buffered']
    #allocation6 [shape = 's32[1]{0}', space=sflag, size = 0x4, scoped, tag = 'scoped memory for multiclass_classifier.1']
    #allocation7 [shape = 'u8[131072]{0}', space=vmem, size = 0x20000, scoped, tag = 'input window, operand 5, single buffered']
    #allocation8 [shape = 'u8[4096]{0}', space=vmem, size = 0x1000, scoped, tag = 'output window, operand 0, single buffered']
    %12 = vsyncpa [#allocation3], 0
    %13 = vsyncpa [#allocation6], 0
    %14 = vsyncpa [#allocation4], 0
    // Predicated region
    $region2: #{multiclass_classifier.1} parent=1 // pred_check
      _
    $region3: #{multiclass_classifier.1} parent=1 // pred_check_branch
      %16 = sbr.rel (0) target = $region5
    $region4: #{multiclass_classifier.1} parent=1 // pred_region
      _
    $region5: #{multiclass_classifier.1} parent=1 // pred_fallthru
      _
    // Predicated region
    $region6: #{multiclass_classifier.1} parent=1 // pred_check
      _
    $region7: #{multiclass_classifier.1} parent=1 // pred_check_branch
      %18 = sbr.rel (0) target = $region9
    $region8: #{multiclass_classifier.1} parent=1 // pred_region
      _
    $region9: #{multiclass_classifier.1} parent=1 // pred_fallthru
      _
    // Predicated region
    $region10: #{multiclass_classifier.1} parent=1 // pred_check
      _
    $region11: #{multiclass_classifier.1} parent=1 // pred_check_branch
      %20 = sbr.rel (0) target = $region13
    $region12: #{multiclass_classifier.1} parent=1 // pred_region
      %22 = vsyncadd [#allocation3], 0
      %s23 = sshll.u32 %s2, 4
      %s24 = int_to_ptr.hbm [resolvable:$true] %s23
      %s25 = sshll.u32 [#allocation2], 4
      %s26 = int_to_ptr.vmem [resolvable:$true] %s25
      %31 = dma.hbm_to_vmem [thread:$0]  %s24, 1024, %s26, [#allocation3], 256, 256, 16
    $region13: #{multiclass_classifier.1} parent=1 // pred_fallthru
      _
    // Predicated region
    $region14: #{multiclass_classifier.1} parent=1 // pred_check
      _
    $region15: #{multiclass_classifier.1} parent=1 // pred_check_branch
      %33 = sbr.rel (0) target = $region17
    $region16: #{multiclass_classifier.1} parent=1 // pred_region
      %35 = vsyncadd [#allocation6], 0
      %s36 = sshll.u32 %s3, 4
      %s37 = int_to_ptr.hbm [resolvable:$true] %s36
      %s38 = sshll.u32 [#allocation5], 4
      %s39 = int_to_ptr.vmem [resolvable:$true] %s38
      %44 = dma.hbm_to_vmem [thread:$0]  %s37, 4096, %s39, [#allocation6], 256, 256, 16
    $region17: #{multiclass_classifier.1} parent=1 // pred_fallthru
      _
    // Predicated region
    $region18: #{multiclass_classifier.1} parent=1 // pred_check
      _
    $region19: #{multiclass_classifier.1} parent=1 // pred_check_branch
      %46 = sbr.rel (0) target = $region21
    $region20: #{multiclass_classifier.1} parent=1 // pred_region
      _
    $region21: #{multiclass_classifier.1} parent=1 // pred_fallthru
      _
    // Predicated region
    $region22: #{multiclass_classifier.1} parent=1 // pred_check
      _
    $region23: #{multiclass_classifier.1} parent=1 // pred_check_branch
      %48 = sbr.rel (0) target = $region25
    $region24: #{multiclass_classifier.1} parent=1 // pred_region
      %50 = vsyncadd [#allocation6], 0
      %s51 = sshll.u32 %s5, 4
      %s52 = int_to_ptr.hbm [resolvable:$true] %s51
      %s53 = sshll.u32 [#allocation7], 4
      %s54 = int_to_ptr.vmem [resolvable:$true] %s53
      %59 = dma.hbm_to_vmem [thread:$0]  %s52, 4096, %s54, [#allocation6], 128, 128, 8
    $region25: #{multiclass_classifier.1} parent=1 // pred_fallthru
      _
    // Predicated region
    $region26: #{multiclass_classifier.1} parent=1 // pred_check
      _
    $region27: #{multiclass_classifier.1} parent=1 // pred_check_branch
      %61 = sbr.rel (0) target = $region29
    $region28: #{multiclass_classifier.1} parent=1 // pred_region
      _
    $region29: #{multiclass_classifier.1} parent=1 // pred_fallthru
      _
    // Predicated region
    $region30: #{multiclass_classifier.1} parent=1 // pred_check
      _
    $region31: #{multiclass_classifier.1} parent=1 // pred_check_branch
      %63 = sbr.rel (0) target = $region33
    $region32: #{multiclass_classifier.1} parent=1 // pred_region
      %65 = dma.done [#allocation3], 1024
    $region33: #{multiclass_classifier.1} parent=1 // pred_fallthru
      _
    // Predicated region
    $region34: #{multiclass_classifier.1} parent=1 // pred_check
      _
    $region35: #{multiclass_classifier.1} parent=1 // pred_check_branch
      %67 = sbr.rel (0) target = $region37
    $region36: #{multiclass_classifier.1} parent=1 // pred_region
      %69 = dma.done [#allocation6], 4096
    $region37: #{multiclass_classifier.1} parent=1 // pred_fallthru
      _
    // Predicated region
    $region38: #{multiclass_classifier.1} parent=1 // pred_check
      _
    $region39: #{multiclass_classifier.1} parent=1 // pred_check_branch
      %71 = sbr.rel (0) target = $region41
    $region40: #{multiclass_classifier.1} parent=1 // pred_region
      %73 = dma.done [#allocation6], 4096
    $region41: #{multiclass_classifier.1} parent=1 // pred_fallthru
      _
    %v74 = vld [vmem:[%s1] sm:$0xff]
    %v75 = vlaneseq
    %v76 = vand.u32 %v75, 127
    %77 = vset.pattern.permute.xlu0 0
    %78 = vperm.xlu0 %77, %v74
    %v79 = vpop.permute.xlu0 %78
    %vm80 = vcmp.eq.s32.totalorder %v76, %v79
    %v81 = vsel %vm80, 1, 0
    %v82 = vcvt.s32.f32 %v81
    %v83 = vadd.f32 %v82, 0.0
    %v84 = vsub.s32 %v76, 18
    %85 = vset.pattern.permute.xlu0 1
    %86 = vperm.xlu0 %85, %v74
    %v87 = vpop.permute.xlu0 %86
    %vm88 = vcmp.eq.s32.totalorder %v84, %v87
    %v89 = vsel %vm88, 1, 0
    %v90 = vcvt.s32.f32 %v89
    %v91 = vadd.f32 %v83, %v90
    %v92 = vsub.s32 %v76, 36
    %93 = vset.pattern.permute.xlu0 2
    %94 = vperm.xlu0 %93, %v74
    %v95 = vpop.permute.xlu0 %94
    %vm96 = vcmp.eq.s32.totalorder %v92, %v95
    %v97 = vsel %vm96, 1, 0
    %v98 = vcvt.s32.f32 %v97
    %v99 = vadd.f32 %v91, %v98
    %v100 = vsub.s32 %v76, 54
    %101 = vset.pattern.permute.xlu0 3
    %102 = vperm.xlu0 %101, %v74
    %v103 = vpop.permute.xlu0 %102
    %vm104 = vcmp.eq.s32.totalorder %v100, %v103
    %v105 = vsel %vm104, 1, 0
    %v106 = vcvt.s32.f32 %v105
    %v107 = vadd.f32 %v99, %v106
    %v108 = vld [vmem:[%s0] sm:$0xff]
    %v109 = vld [vmem:[#allocation2] sm:$0xff]
    %v110 = vld [vmem:[#allocation2 + $0x8] sm:$0xff]
    %v111 = vld [vmem:[#allocation2 + $0x10] sm:$0xff]
    %v112 = vld [vmem:[#allocation2 + $0x18] sm:$0xff]
    %v113 = vld [vmem:[#allocation2 + $0x20] sm:$0xff]
    %v114 = vld [vmem:[#allocation2 + $0x28] sm:$0xff]
    %v115 = vld [vmem:[#allocation2 + $0x30] sm:$0xff]
    %v116 = vld [vmem:[#allocation2 + $0x38] sm:$0xff]
    %v117 = vld [vmem:[#allocation5] sm:$0xff]
    %v118 = vld [vmem:[#allocation5 + $0x8] sm:$0xff]
    %v119 = vld [vmem:[#allocation5 + $0x10] sm:$0xff]
    %v120 = vld [vmem:[#allocation5 + $0x18] sm:$0xff]
    %v121 = vld [vmem:[#allocation5 + $0x20] sm:$0xff]
    %v122 = vld [vmem:[#allocation5 + $0x28] sm:$0xff]
    %v123 = vld [vmem:[#allocation5 + $0x30] sm:$0xff]
    %v124 = vld [vmem:[#allocation5 + $0x38] sm:$0xff]
    %v125 = vld [vmem:[#allocation5 + $0x40] sm:$0xff]
    %v126 = vld [vmem:[#allocation5 + $0x48] sm:$0xff]
    %v127 = vld [vmem:[#allocation5 + $0x50] sm:$0xff]
    %v128 = vld [vmem:[#allocation5 + $0x58] sm:$0xff]
    %v129 = vld [vmem:[#allocation5 + $0x60] sm:$0xff]
    %v130 = vld [vmem:[#allocation5 + $0x68] sm:$0xff]
    %v131 = vld [vmem:[#allocation5 + $0x70] sm:$0xff]
    %v132 = vld [vmem:[#allocation5 + $0x78] sm:$0xff]
    %v133 = vld [vmem:[#allocation5 + $0x80] sm:$0xff]
    %v134 = vld [vmem:[#allocation5 + $0x88] sm:$0xff]
    %v135 = vld [vmem:[#allocation5 + $0x90] sm:$0xff]
    %v136 = vld [vmem:[#allocation5 + $0x98] sm:$0xff]
    %v137 = vld [vmem:[#allocation5 + $0xa0] sm:$0xff]
    %v138 = vld [vmem:[#allocation5 + $0xa8] sm:$0xff]
    %v139 = vld [vmem:[#allocation5 + $0xb0] sm:$0xff]
    %v140 = vld [vmem:[#allocation5 + $0xb8] sm:$0xff]
    %v141 = vld [vmem:[#allocation5 + $0xc0] sm:$0xff]
    %v142 = vld [vmem:[#allocation5 + $0xc8] sm:$0xff]
    %v143 = vld [vmem:[#allocation5 + $0xd0] sm:$0xff]
    %v144 = vld [vmem:[#allocation5 + $0xd8] sm:$0xff]
    %v145 = vld [vmem:[#allocation5 + $0xe0] sm:$0xff]
    %v146 = vld [vmem:[#allocation5 + $0xe8] sm:$0xff]
    %v147 = vld [vmem:[#allocation5 + $0xf0] sm:$0xff]
    %v148 = vld [vmem:[#allocation5 + $0xf8] sm:$0xff]
    %149 = vmatpush.msra.mxu0 %v147
    %150 = vmatpush.msra.mxu0 %v145
    %151 = vmatpush.msra.mxu0 %v143
    %152 = vmatpush.msra.mxu0 %v141
    %153 = vmatpush.msra.mxu0 %v139
    %154 = vmatpush.msra.mxu0 %v137
    %155 = vmatpush.msra.mxu0 %v135
    %156 = vmatpush.msra.mxu0 %v133
    %157 = vmatpush.msra.mxu0 %v131
    %158 = vmatpush.msra.mxu0 %v129
    %159 = vmatpush.msra.mxu0 %v127
    %160 = vmatpush.msra.mxu0 %v125
    %161 = vmatpush.msra.mxu0 %v123
    %162 = vmatpush.msra.mxu0 %v121
    %163 = vmatpush.msra.mxu0 %v119
    %164 = vmatpush.msra.mxu0 %v117
    %165 = vmatmul.f32.gmra.mxu0 %v107
    %v166 = vpop.f32.mrf.mxu0
    %v167 = vadd.f32 0.0, %v166
    %168 = vdwg.mxu0
    %169 = vmatpush.msra.mxu0 %v148
    %170 = vmatpush.msra.mxu0 %v146
    %171 = vmatpush.msra.mxu0 %v144
    %172 = vmatpush.msra.mxu0 %v142
    %173 = vmatpush.msra.mxu0 %v140
    %174 = vmatpush.msra.mxu0 %v138
    %175 = vmatpush.msra.mxu0 %v136
    %176 = vmatpush.msra.mxu0 %v134
    %177 = vmatpush.msra.mxu0 %v132
    %178 = vmatpush.msra.mxu0 %v130
    %179 = vmatpush.msra.mxu0 %v128
    %180 = vmatpush.msra.mxu0 %v126
    %181 = vmatpush.msra.mxu0 %v124
    %182 = vmatpush.msra.mxu0 %v122
    %183 = vmatpush.msra.mxu0 %v120
    %184 = vmatpush.msra.mxu0 %v118
    %185 = vmatmul.f32.gmra.mxu0 %v107
    %v186 = vpop.f32.mrf.mxu0
    %v187 = vadd.f32 0.0, %v186
    %188 = vdwg.mxu0
    %vm189 = vcmask 261120
    %v191 = vsel %vm189, %v108, 0
    %193 = vmatpush.msra.mxu0 0.0
    %194 = vmatpush.msra.mxu0 0.0
    %195 = vmatpush.msra.mxu0 0.0
    %196 = vmatpush.msra.mxu0 0.0
    %197 = vmatpush.msra.mxu0 0.0
    %198 = vmatpush.msra.mxu0 0.0
    %199 = vmatpush.msra.mxu0 0.0
    %200 = vmatpush.msra.mxu0 0.0
    %201 = vmatpush.msra.mxu0 0.0
    %202 = vmatpush.msra.mxu0 0.0
    %203 = vmatpush.msra.mxu0 0.0
    %204 = vmatpush.msra.mxu0 0.0
    %205 = vmatpush.msra.mxu0 %v115
    %206 = vmatpush.msra.mxu0 %v113
    %207 = vmatpush.msra.mxu0 %v111
    %208 = vmatpush.msra.mxu0 %v109
    %209 = vmatmul.f32.gmra.mxu0 %v191
    %v210 = vpop.f32.mrf.mxu0
    %v211 = vadd.f32 %v167, %v210
    %212 = vdwg.mxu0
    %213 = vmatpush.msra.mxu0 0.0
    %214 = vmatpush.msra.mxu0 0.0
    %215 = vmatpush.msra.mxu0 0.0
    %216 = vmatpush.msra.mxu0 0.0
    %217 = vmatpush.msra.mxu0 0.0
    %218 = vmatpush.msra.mxu0 0.0
    %219 = vmatpush.msra.mxu0 0.0
    %220 = vmatpush.msra.mxu0 0.0
    %221 = vmatpush.msra.mxu0 0.0
    %222 = vmatpush.msra.mxu0 0.0
    %223 = vmatpush.msra.mxu0 0.0
    %224 = vmatpush.msra.mxu0 0.0
    %225 = vmatpush.msra.mxu0 %v116
    %226 = vmatpush.msra.mxu0 %v114
    %227 = vmatpush.msra.mxu0 %v112
    %228 = vmatpush.msra.mxu0 %v110
    %229 = vmatmul.f32.gmra.mxu0 %v191
    %v230 = vpop.f32.mrf.mxu0
    %v231 = vadd.f32 %v187, %v230
    %232 = vdwg.mxu0
    %v233 = vld [vmem:[%s4] sm:$0x3]
    %v235 = vperm.slane %v233, 0
    %v236 = vperm.slane %v233, 1
    %v239 = vadd.f32 %v211, %v235
    %v240 = vadd.f32 %v231, %v236
    %v241 = vmax.f32 %v239, 0.0
    %v242 = vmax.f32 %v240, 0.0
    %v243 = vld [vmem:[#allocation7] sm:$0xff]
    %v244 = vld [vmem:[#allocation7 + $0x8] sm:$0xff]
    %v245 = vld [vmem:[#allocation7 + $0x10] sm:$0xff]
    %v246 = vld [vmem:[#allocation7 + $0x18] sm:$0xff]
    %v247 = vld [vmem:[#allocation7 + $0x20] sm:$0xff]
    %v248 = vld [vmem:[#allocation7 + $0x28] sm:$0xff]
    %v249 = vld [vmem:[#allocation7 + $0x30] sm:$0xff]
    %v250 = vld [vmem:[#allocation7 + $0x38] sm:$0xff]
    %v251 = vld [vmem:[#allocation7 + $0x40] sm:$0xff]
    %v252 = vld [vmem:[#allocation7 + $0x48] sm:$0xff]
    %v253 = vld [vmem:[#allocation7 + $0x50] sm:$0xff]
    %v254 = vld [vmem:[#allocation7 + $0x58] sm:$0xff]
    %v255 = vld [vmem:[#allocation7 + $0x60] sm:$0xff]
    %v256 = vld [vmem:[#allocation7 + $0x68] sm:$0xff]
    %v257 = vld [vmem:[#allocation7 + $0x70] sm:$0xff]
    %v258 = vld [vmem:[#allocation7 + $0x78] sm:$0xff]
    %v259 = vld [vmem:[#allocation7 + $0x80] sm:$0xff]
    %v260 = vld [vmem:[#allocation7 + $0x88] sm:$0xff]
    %v261 = vld [vmem:[#allocation7 + $0x90] sm:$0xff]
    %v262 = vld [vmem:[#allocation7 + $0x98] sm:$0xff]
    %v263 = vld [vmem:[#allocation7 + $0xa0] sm:$0xff]
    %v264 = vld [vmem:[#allocation7 + $0xa8] sm:$0xff]
    %v265 = vld [vmem:[#allocation7 + $0xb0] sm:$0xff]
    %v266 = vld [vmem:[#allocation7 + $0xb8] sm:$0xff]
    %v267 = vld [vmem:[#allocation7 + $0xc0] sm:$0xff]
    %v268 = vld [vmem:[#allocation7 + $0xc8] sm:$0xff]
    %v269 = vld [vmem:[#allocation7 + $0xd0] sm:$0xff]
    %v270 = vld [vmem:[#allocation7 + $0xd8] sm:$0xff]
    %v271 = vld [vmem:[#allocation7 + $0xe0] sm:$0xff]
    %v272 = vld [vmem:[#allocation7 + $0xe8] sm:$0xff]
    %v273 = vld [vmem:[#allocation7 + $0xf0] sm:$0xff]
    %v274 = vld [vmem:[#allocation7 + $0xf8] sm:$0xff]
    %v275 = vld [vmem:[%s6] sm:$0x1]
    %v277 = vperm.slane %v275, 0
    %279 = vmatpush.msra.mxu0 %v258
    %280 = vmatpush.msra.mxu0 %v257
    %281 = vmatpush.msra.mxu0 %v256
    %282 = vmatpush.msra.mxu0 %v255
    %283 = vmatpush.msra.mxu0 %v254
    %284 = vmatpush.msra.mxu0 %v253
    %285 = vmatpush.msra.mxu0 %v252
    %286 = vmatpush.msra.mxu0 %v251
    %287 = vmatpush.msra.mxu0 %v250
    %288 = vmatpush.msra.mxu0 %v249
    %289 = vmatpush.msra.mxu0 %v248
    %290 = vmatpush.msra.mxu0 %v247
    %291 = vmatpush.msra.mxu0 %v246
    %292 = vmatpush.msra.mxu0 %v245
    %293 = vmatpush.msra.mxu0 %v244
    %294 = vmatpush.msra.mxu0 %v243
    %295 = vmatmul.f32.gmra.mxu0 %v241
    %v296 = vpop.f32.mrf.mxu0
    %v297 = vadd.f32 %v277, %v296
    %298 = vdwg.mxu0
    %299 = vmatpush.msra.mxu0 %v274
    %300 = vmatpush.msra.mxu0 %v273
    %301 = vmatpush.msra.mxu0 %v272
    %302 = vmatpush.msra.mxu0 %v271
    %303 = vmatpush.msra.mxu0 %v270
    %304 = vmatpush.msra.mxu0 %v269
    %305 = vmatpush.msra.mxu0 %v268
    %306 = vmatpush.msra.mxu0 %v267
    %307 = vmatpush.msra.mxu0 %v266
    %308 = vmatpush.msra.mxu0 %v265
    %309 = vmatpush.msra.mxu0 %v264
    %310 = vmatpush.msra.mxu0 %v263
    %311 = vmatpush.msra.mxu0 %v262
    %312 = vmatpush.msra.mxu0 %v261
    %313 = vmatpush.msra.mxu0 %v260
    %314 = vmatpush.msra.mxu0 %v259
    %315 = vmatmul.f32.gmra.mxu0 %v242
    %v316 = vpop.f32.mrf.mxu0
    %v317 = vadd.f32 %v297, %v316
    %318 = vdwg.mxu0
    %319 = vst [vmem:[#allocation8] sm:$0xff] %v317
    // Predicated region
    $region42: #{multiclass_classifier.1} parent=1 // pred_check
      _
    $region43: #{multiclass_classifier.1} parent=1 // pred_check_branch
      %321 = sbr.rel (0) target = $region45
    $region44: #{multiclass_classifier.1} parent=1 // pred_region
      %323 = vsyncadd [#allocation4], 0
      %s325 = sshll.u32 [#allocation8], 4
      %s326 = int_to_ptr.vmem [resolvable:$true] %s325
      %s327 = sshll.u32 %s7, 4
      %s328 = int_to_ptr.hbm [resolvable:$true] %s327
      %330 = dma.vmem_to_hbm [thread:$0]  %s326, 128, %s328, [#allocation4]
    $region45: #{multiclass_classifier.1} parent=1 // pred_fallthru
      _
    // Predicated region
    $region46: #{multiclass_classifier.1} parent=1 // pred_check
      _
    $region47: #{multiclass_classifier.1} parent=1 // pred_check_branch
      %332 = sbr.rel (0) target = $region49
    $region48: #{multiclass_classifier.1} parent=1 // pred_region
      %334 = dma.done [#allocation4], 128
    $region49: #{multiclass_classifier.1} parent=1 // pred_fallthru
      _
    %335 = vsyncpa [#allocation3], 1
    %336 = vsyncpa [#allocation6], 1
    %337 = vsyncpa [#allocation4], 1

</llo_original>
